<compile_context>
chip_gen: v5e
topology: v5e:2x2
jax: 0.10.0
libtpu: 0.0.40
codegen_flags: <defaults>
</compile_context>

<pallas_src>
import functools

import jax
import jax.numpy as jnp
from jax import lax
from jax.experimental import pallas as pl
from jax.experimental.pallas import tpu as pltpu


def _bce_loss_kernel(y_true_ref, y_pred_ref, w_ref, out_ref, acc_ref,
                     *, total_rows, block_rows, mask_tail):
    i = pl.program_id(0)

    @pl.when(i == 0)
    def _init():
        acc_ref[0, 0] = jnp.float32(0.0)

    y_true = y_true_ref[...]                           # (TB, 1) int32
    y_pred = y_pred_ref[...].astype(jnp.float32)       # (TB, C) native -> f32
    w = w_ref[...]                                     # (1, C)  f32

    tb, c = y_pred.shape

    # One-hot via lane-iota compare (== torch.scatter of ones), then select the
    # true-class probability/weight per row with a masked lane reduce (XLU).
    class_ids = lax.broadcasted_iota(jnp.int32, (tb, c), 1)
    hot = class_ids == y_true                          # (TB, C) bool

    p_sel = jnp.sum(jnp.where(hot, y_pred, 0.0), axis=1, keepdims=True)  # (TB,1)
    w_sel = jnp.sum(jnp.where(hot, jnp.broadcast_to(w, (tb, c)), 0.0),
                    axis=1, keepdims=True)                               # (TB,1)

    # clamp + log only on the one contributing element per row.
    p_sel = jnp.clip(p_sel, 0.01, 1.0 - 0.01)
    row_loss = -w_sel * jnp.log(p_sel + 0.01)          # (TB, 1)

    if mask_tail:
        # Partially filled last tile: zero padded rows with where (not multiply)
        # so garbage in the padded region can never leak NaNs. clip() above
        # already guarantees the log itself is finite on padded rows.
        row_ids = i * block_rows + lax.broadcasted_iota(jnp.int32, (tb, 1), 0)
        row_loss = jnp.where(row_ids < total_rows, row_loss, 0.0)

    acc_ref[0, 0] += jnp.sum(row_loss)

    @pl.when(i == pl.num_programs(0) - 1)
    def _finalize():
        denom = jnp.sum(w) * jnp.float32(total_rows)   # grid-invariant, done once
        out_ref[0, 0] = acc_ref[0, 0] / denom


def _pick_block_rows(batch, num_classes, itemsize):
    # Keep ~<=4 MiB per y_pred buffer so 2x double-buffering + y_true/w stay
    # well inside every generation's scoped VMEM default (v5e 16 MiB).
    budget_bytes = 4 * 1024 * 1024
    tb = budget_bytes // max(1, num_classes * itemsize)
    tb = max(8, min(1024, (tb // 8) * 8))              # multiple of 8 sublanes
    if batch <= tb:
        return batch                                   # whole batch in one tile
    return tb


def bce_loss(y_true, y_pred, class_weight, *, block_rows=None):
    """y_true: (B,) or (B,1) int, y_pred: (B,C) float, class_weight: (C,) -> f32 scalar."""
    batch, num_classes = y_pred.shape
    y_true = y_true.astype(jnp.int32).reshape(batch, 1)
    # NOTE: no wrapper upcast of y_pred — it is DMA'd in its native dtype and
    # cast inside the kernel (halves HBM traffic for bf16 inputs).
    w = class_weight.astype(jnp.float32).reshape(1, num_classes)

    if block_rows is None:
        block_rows = _pick_block_rows(batch, num_classes, y_pred.dtype.itemsize)
    num_tiles = pl.cdiv(batch, block_rows)
    mask_tail = (batch % block_rows) != 0

    kernel = functools.partial(
        _bce_loss_kernel,
        total_rows=batch, block_rows=block_rows, mask_tail=mask_tail)

    out = pl.pallas_call(
        kernel,
        out_shape=jax.ShapeDtypeStruct((1, 1), jnp.float32),
        grid=(num_tiles,),
        in_specs=[
            pl.BlockSpec((block_rows, 1), lambda i: (i, 0)),            # y_true
            pl.BlockSpec((block_rows, num_classes), lambda i: (i, 0)),  # y_pred
            pl.BlockSpec((1, num_classes), lambda i: (0, 0)),           # weights
        ],
        out_specs=pl.BlockSpec(memory_space=pltpu.SMEM),                # (1,1) scalar
        scratch_shapes=[pltpu.SMEM((1, 1), jnp.float32)],               # running sum
        compiler_params=pltpu.CompilerParams(
            # Scalar accumulator carried across the batch axis -> "arbitrary".
            dimension_semantics=("arbitrary",),
        ),
    )(y_true, y_pred, w)
    return out[0, 0]


if __name__ == "__main__":
    key = jax.random.PRNGKey(0)
    num_classes = 4
    class_weight = jnp.array([1.0, 2.0, 3.0, 4.0], dtype=jnp.float32)

    def reference(y_true, y_pred, cw):
        b = y_pred.shape[0]
        onehot = jax.nn.one_hot(y_true.reshape(-1), num_classes, dtype=jnp.float32)
        yp = jnp.clip(y_pred.astype(jnp.float32), 0.01, 0.99)
        bce = -onehot * jnp.log(yp + 0.01) * cw[None, :]
        return jnp.sum(bce) / (jnp.sum(cw) * b)

    # Case 1: single tile (batch=8, num_classes=4), like the module's use.
    k1, k2, k3, k4 = jax.random.split(key, 4)
    y_true = jax.random.randint(k1, (8, 1), 0, num_classes, dtype=jnp.int32)
    y_pred = jax.random.uniform(k2, (8, num_classes), dtype=jnp.float32)
    loss = bce_loss(y_true, y_pred, class_weight)
    jax.block_until_ready(loss)
    ref = reference(y_true, y_pred, class_weight)
    assert jnp.allclose(loss, ref, rtol=1e-5, atol=1e-6), (loss, ref)

    # Case 2: multi-tile grid with a partially filled last tile (batch=20, TB=8).
    y_true2 = jax.random.randint(k3, (20, 1), 0, num_classes, dtype=jnp.int32)
    y_pred2 = jax.random.uniform(k4, (20, num_classes), dtype=jnp.float32)
    loss2 = bce_loss(y_true2, y_pred2, class_weight, block_rows=8)
    jax.block_until_ready(loss2)
    ref2 = reference(y_true2, y_pred2, class_weight)
    assert jnp.allclose(loss2, ref2, rtol=1e-5, atol=1e-6), (loss2, ref2)

    # Case 3: bf16 predictions (native-dtype DMA, in-kernel f32 cast).
    y_pred3 = y_pred2.astype(jnp.bfloat16)
    loss3 = bce_loss(y_true2, y_pred3, class_weight, block_rows=8)
    jax.block_until_ready(loss3)
    ref3 = reference(y_true2, y_pred3, class_weight)
    assert jnp.allclose(loss3, ref3, rtol=1e-2, atol=1e-3), (loss3, ref3)

    print("KERNEL_OK")
</pallas_src>

<mosaic_0001>
module attributes {stable_mosaic.version = 11 : i64} {
  func.func @_bce_loss_kernel(%arg0: i32, %arg1: memref<8x1xi32, #tpu.memory_space<vmem>>, %arg2: memref<8x4xf32, #tpu.memory_space<vmem>>, %arg3: memref<1x4xf32, #tpu.memory_space<vmem>>, %arg4: memref<1x1xf32, #tpu.memory_space<smem>>, %arg5: memref<1x1xf32, #tpu.memory_space<smem>>) attributes {dimension_semantics = [#tpu.dimension_semantics<arbitrary>], iteration_bounds = array<i64: 1>, scalar_prefetch = 0 : i64, scratch_operands = 1 : i64, tpu.core_type = #tpu.core_type<tc>, window_params = [{transform_indices = @transform_0, window_bounds = array<i64: 8, 1>}, {transform_indices = @transform_1, window_bounds = array<i64: 8, 4>}, {pipeline_mode = #tpu.pipeline_mode<synchronous>, transform_indices = @transform_2, window_bounds = array<i64: 1, 4>}, {transform_indices = @transform_3, window_bounds = array<i64: 1, 1>}]} {
    %c0_i32 = arith.constant 0 : i32
    %0 = arith.cmpi eq, %arg0, %c0_i32 : i32
    %1 = arith.extui %0 : i1 to i32
    %c0_i32_0 = arith.constant 0 : i32
    %2 = arith.cmpi ne, %1, %c0_i32_0 : i32
    scf.if %2 {
      %cst_20 = arith.constant 0.000000e+00 : f32
      %c0_21 = arith.constant 0 : index
      %c0_22 = arith.constant 0 : index
      %39 = memref.load %arg5[%c0_21, %c0_22] : memref<1x1xf32, #tpu.memory_space<smem>>
      memref.store %cst_20, %arg5[%c0_21, %c0_22] : memref<1x1xf32, #tpu.memory_space<smem>>
    } else {
    }
    %c0 = arith.constant 0 : index
    %c0_1 = arith.constant 0 : index
    %3 = vector.load %arg1[%c0, %c0_1] : memref<8x1xi32, #tpu.memory_space<vmem>>, vector<8x1xi32>
    %c0_2 = arith.constant 0 : index
    %c0_3 = arith.constant 0 : index
    %4 = vector.load %arg2[%c0_2, %c0_3] : memref<8x4xf32, #tpu.memory_space<vmem>>, vector<8x4xf32>
    %c0_4 = arith.constant 0 : index
    %c0_5 = arith.constant 0 : index
    %5 = vector.load %arg3[%c0_4, %c0_5] : memref<1x4xf32, #tpu.memory_space<vmem>>, vector<1x4xf32>
    %6 = tpu.iota {dimensions = array<i32: 1>} : vector<8x4xi32>
    %7 = vector.broadcast %3 : vector<8x1xi32> to vector<8x4xi32>
    %8 = arith.cmpi eq, %6, %7 : vector<8x4xi32>
    %cst = arith.constant 0.000000e+00 : f32
    %9 = vector.broadcast %cst : f32 to vector<8x4xf32>
    %10 = arith.select %8, %4, %9 : vector<8x4xi1>, vector<8x4xf32>
    %cst_6 = arith.constant dense<0.000000e+00> : vector<8xf32>
    %11 = vector.multi_reduction <add>, %10, %cst_6 [1] : vector<8x4xf32> to vector<8xf32>
    %12 = vector.shape_cast %11 : vector<8xf32> to vector<8x1xf32>
    %13 = vector.shape_cast %5 : vector<1x4xf32> to vector<1x4xf32>
    %14 = vector.broadcast %13 : vector<1x4xf32> to vector<8x4xf32>
    %cst_7 = arith.constant 0.000000e+00 : f32
    %15 = vector.broadcast %cst_7 : f32 to vector<8x4xf32>
    %16 = arith.select %8, %14, %15 : vector<8x4xi1>, vector<8x4xf32>
    %cst_8 = arith.constant dense<0.000000e+00> : vector<8xf32>
    %17 = vector.multi_reduction <add>, %16, %cst_8 [1] : vector<8x4xf32> to vector<8xf32>
    %18 = vector.shape_cast %17 : vector<8xf32> to vector<8x1xf32>
    %cst_9 = arith.constant 0.00999999977 : f32
    %cst_10 = arith.constant 9.900000e-01 : f32
    %19 = vector.broadcast %cst_9 : f32 to vector<8x1xf32>
    %20 = arith.maximumf %19, %12 : vector<8x1xf32>
    %21 = vector.broadcast %cst_10 : f32 to vector<8x1xf32>
    %22 = arith.minimumf %21, %20 : vector<8x1xf32>
    %cst_11 = arith.constant 0.000000e+00 : f32
    %23 = vector.broadcast %cst_11 : f32 to vector<8x1xf32>
    %24 = arith.subf %23, %18 : vector<8x1xf32>
    %cst_12 = arith.constant 0.00999999977 : f32
    %25 = vector.broadcast %cst_12 : f32 to vector<8x1xf32>
    %26 = arith.addf %22, %25 : vector<8x1xf32>
    %27 = math.log %26 : vector<8x1xf32>
    %28 = arith.mulf %24, %27 : vector<8x1xf32>
    %c0_13 = arith.constant 0 : index
    %c0_14 = arith.constant 0 : index
    %29 = memref.load %arg5[%c0_13, %c0_14] : memref<1x1xf32, #tpu.memory_space<smem>>
    %30 = vector.shape_cast %28 : vector<8x1xf32> to vector<1x8x1xf32>
    %cst_15 = arith.constant dense<0.000000e+00> : vector<1xf32>
    %31 = vector.multi_reduction <add>, %30, %cst_15 [1, 2] : vector<1x8x1xf32> to vector<1xf32>
    %32 = vector.shape_cast %31 : vector<1xf32> to vector<1x1x1xf32>
    %33 = vector.extract %32[0, 0, 0] : f32 from vector<1x1x1xf32>
    %34 = arith.addf %29, %33 : f32
    %c0_16 = arith.constant 0 : index
    %c0_17 = arith.constant 0 : index
    %35 = memref.load %arg5[%c0_16, %c0_17] : memref<1x1xf32, #tpu.memory_space<smem>>
    memref.store %34, %arg5[%c0_16, %c0_17] : memref<1x1xf32, #tpu.memory_space<smem>>
    %c0_i32_18 = arith.constant 0 : i32
    %36 = arith.cmpi eq, %arg0, %c0_i32_18 : i32
    %37 = arith.extui %36 : i1 to i32
    %c0_i32_19 = arith.constant 0 : i32
    %38 = arith.cmpi ne, %37, %c0_i32_19 : i32
    scf.if %38 {
      %39 = vector.shape_cast %5 : vector<1x4xf32> to vector<1x1x4xf32>
      %cst_20 = arith.constant dense<0.000000e+00> : vector<1xf32>
      %40 = vector.multi_reduction <add>, %39, %cst_20 [1, 2] : vector<1x1x4xf32> to vector<1xf32>
      %41 = vector.shape_cast %40 : vector<1xf32> to vector<1x1x1xf32>
      %42 = vector.extract %41[0, 0, 0] : f32 from vector<1x1x1xf32>
      %cst_21 = arith.constant 8.000000e+00 : f32
      %43 = arith.mulf %42, %cst_21 : f32
      %c0_22 = arith.constant 0 : index
      %c0_23 = arith.constant 0 : index
      %44 = memref.load %arg5[%c0_22, %c0_23] : memref<1x1xf32, #tpu.memory_space<smem>>
      %45 = arith.divf %44, %43 : f32
      %c0_24 = arith.constant 0 : index
      %c0_25 = arith.constant 0 : index
      %46 = memref.load %arg4[%c0_24, %c0_25] : memref<1x1xf32, #tpu.memory_space<smem>>
      memref.store %45, %arg4[%c0_24, %c0_25] : memref<1x1xf32, #tpu.memory_space<smem>>
    } else {
    }
    return
  }
  func.func @transform_0(%arg0: i32) -> (i32, i32) {
    %c0_i32 = arith.constant 0 : i32
    %c0_i32_0 = arith.constant 0 : i32
    return %arg0, %c0_i32 : i32, i32
  }
  func.func @transform_1(%arg0: i32) -> (i32, i32) {
    %c0_i32 = arith.constant 0 : i32
    %c0_i32_0 = arith.constant 0 : i32
    return %arg0, %c0_i32 : i32, i32
  }
  func.func @transform_2(%arg0: i32) -> (i32, i32) {
    %c0_i32 = arith.constant 0 : i32
    %c0_i32_0 = arith.constant 0 : i32
    %c0_i32_1 = arith.constant 0 : i32
    return %c0_i32, %c0_i32_0 : i32, i32
  }
  func.func @transform_3(%arg0: i32) -> (i32, i32) {
    %c0_i32 = arith.constant 0 : i32
    %c0_i32_0 = arith.constant 0 : i32
    %c0_i32_1 = arith.constant 0 : i32
    return %c0_i32, %c0_i32_0 : i32, i32
  }
}

</mosaic_0001>

<llo_original>
// kernel: tpu_custom_call.1
$region0: #{tpu_custom_call.1}
  #allocation0 [shape = 'u32[]', space=smem, size = 0x4, offset = 0x4, fixed_abs, tag = 'smem constant byte address 0x4 - core index']
  #allocation1 [shape = 'u32[72,128]{1,0:T(1,128)}', space=vmem, size = 0x9000, scoped, tag = 'internal scratch']
  #allocation2 [shape = 'f32[1,1]{1,0:T(1,128)}', space=smem, size = 0x200, scoped, tag = 'scratch operand']
  %s0 = inlined_call_operand.vmem [shape: s32[8,1], index: 0, kind: input, shape index: {}]
  %s1 = inlined_call_operand.vmem [shape: f32[8,4], index: 1, kind: input, shape index: {}]
  %s2 = inlined_call_operand.vmem [shape: f32[1,4], index: 2, kind: input, shape index: {}]
  %s3 = inlined_call_operand.hbm [shape: f32[1,1], index: 3, kind: output, shape index: {}]
  %s4 = sld [smem:[#allocation0]]
  $region30: #{tpu_custom_call.1} parent=0
    _
  %s6 = ssub.s32 1, %s4
  %s7 = scalar_select 0, %s6, %s4
  $region1: #{tpu_custom_call.1} parent=0
    #allocation3 [shape = 'u8[512]{0}', space=smem, size = 0x200, scoped, tag = 'output window, operand 0, single buffered']
    #allocation4 [shape = 's32[1]{0}', space=sflag, size = 0x4, scoped, tag = 'scoped memory for tpu_custom_call.1']
    %8 = vsyncpa [#allocation4], 0
    // Predicated region
    $region2: #{tpu_custom_call.1} parent=1 // pred_check
      _
    $region3: #{tpu_custom_call.1} parent=1 // pred_check_branch
      %10 = sbr.rel (0) target = $region5
    $region4: #{tpu_custom_call.1} parent=1 // pred_region
      _
    $region5: #{tpu_custom_call.1} parent=1 // pred_fallthru
      _
    // Predicated region
    $region6: #{tpu_custom_call.1} parent=1 // pred_check
      _
    $region7: #{tpu_custom_call.1} parent=1 // pred_check_branch
      %12 = sbr.rel (0) target = $region9
    $region8: #{tpu_custom_call.1} parent=1 // pred_region
      _
    $region9: #{tpu_custom_call.1} parent=1 // pred_fallthru
      _
    // Predicated region
    $region10: #{tpu_custom_call.1} parent=1 // pred_check
      _
    $region11: #{tpu_custom_call.1} parent=1 // pred_check_branch
      %14 = sbr.rel (0) target = $region13
    $region12: #{tpu_custom_call.1} parent=1 // pred_region
      _
    $region13: #{tpu_custom_call.1} parent=1 // pred_fallthru
      _
    %p15 = scmp.eq.s32.totalorder 0, 0
    // Predicated region
    $region14: #{tpu_custom_call.1} parent=1 // pred_check
      %p16 = pneg %p15
    $region15: #{tpu_custom_call.1} parent=1 // pred_check_branch
      %18 = sbr.rel (%p16) target = $region17
    $region16: #{tpu_custom_call.1} parent=1 // pred_region
      %s19 = scalar_lea.smem [#allocation2], 0
      %20 = sst [smem:[%s19]] 0.0
    $region17: #{tpu_custom_call.1} parent=1 // pred_fallthru
      _
    %v21 = vld [vmem:[%s0] sm:$0xff]
    %v22 = vld [vmem:[%s1] sm:$0xff]
    %v23 = vld [vmem:[%s2] sm:$0x1]
    %v24 = vlaneseq
    %v25 = vand.u32 %v24, 127
    %26 = vset.pattern.permute.xlu0 0
    %27 = vperm.xlu0 %26, %v21
    %v28 = vpop.permute.xlu0 %27
    %vm29 = vcmp.eq.s32.totalorder %v25, %v28
    %v30 = vsel %vm29, %v22, 0.0
    %vm31 = vcmask 31744
    %v32 = vsel %vm31, %v30, 0.0
    %33 = vadd.xlane.f32.xlu0 %v32
    %v34 = vpop.xlane.xlu0 %33
    %v36 = vperm.slane %v23, 0
    %v38 = vsel %vm29, %v36, 0.0
    %v39 = vsel %vm31, %v38, 0.0
    %40 = vadd.xlane.f32.xlu0 %v39
    %v41 = vpop.xlane.xlu0 %40
    %v42 = vmax.f32 %v34, 0.01
    %v43 = vmin.f32 %v42, 0.99
    %v44 = vsub.f32 0.0, %v41
    %v45 = vadd.f32 %v43, 0.01
    %v46 = vlog2.pop %v45
    %v47 = vmul.f32 %v46, 0.6931472
    %v48 = vmul.f32 %v44, %v47
    %s49 = sld [smem:[#allocation2]]
    %vm50 = vcmask 7168
    %v51 = vsel %vm50, %v48, 0.0
    %52 = vadd.xlane.f32.xlu0 %v51
    %v53 = vpop.xlane.xlu0 %52
    %v54 = vrot.slane %v53, 4
    %v55 = vadd.f32 %v53, %v54
    %v56 = vrot.slane %v55, 2
    %v57 = vadd.f32 %v55, %v56
    %v58 = vrot.slane %v57, 1
    %v59 = vadd.f32 %v57, %v58
    %s60 = vtos %v59
    %s61 = sadd.f32 %s49, %s60
    %s62 = scalar_lea.smem [#allocation2], 0
    %63 = sst [smem:[%s62]] %s61
    // Predicated region
    $region18: #{tpu_custom_call.1} parent=1 // pred_check
      %p64 = pneg %p15
    $region19: #{tpu_custom_call.1} parent=1 // pred_check_branch
      %66 = sbr.rel (%p64) target = $region21
    $region20: #{tpu_custom_call.1} parent=1 // pred_region
      %vm67 = vcmask 24576
      %v68 = vsel %vm67, %v23, 0.0
      %69 = vadd.xlane.f32.xlu0 %v68
      %v70 = vpop.xlane.xlu0 %69
      %v71 = vrot.slane %v70, 4
      %v72 = vadd.f32 %v70, %v71
      %v73 = vrot.slane %v72, 2
      %v74 = vadd.f32 %v72, %v73
      %v75 = vrot.slane %v74, 1
      %v76 = vadd.f32 %v74, %v75
      %s77 = vtos %v76
      %s78 = smul.f32 %s77, 8.0
      %s79 = sld [smem:[#allocation2]]
      %v80 = vstv %s78
      %v81 = vrcp.pop %v80
      %v82 = vmul.f32 %v80, %v81
      %v83 = vsub.f32 1.0, %v82
      %v84 = vmul.f32 %v81, %v83
      %v85 = vadd.f32 %v81, %v84
      %vm86 = vweird.f32 %v80
      %vm87 = vweird.f32 %v81
      %vm88 = vmor %vm86, %vm87
      %v89 = vsel %vm88, %v81, %v85
      %v90 = vand.u32 2147483647, %v80
      %vm91 = vcmp.eq.f32.partialorder %v90, 8.507059e+37
      %v92 = vand.u32 %v80, 2147483648
      %v93 = vor.u32 1.1754944e-38, %v92
      %v94 = vsel %vm91, %v93, %v89
      %s95 = vtos %v94
      %s96 = smul.f32 %s79, %s95
      %s97 = scalar_lea.smem [#allocation3], 0
      %98 = sst [smem:[%s97]] %s96
    $region21: #{tpu_custom_call.1} parent=1 // pred_fallthru
      _
    // Predicated region
    $region22: #{tpu_custom_call.1} parent=1 // pred_check
      _
    $region23: #{tpu_custom_call.1} parent=1 // pred_check_branch
      %100 = sbr.rel (0) target = $region25
    $region24: #{tpu_custom_call.1} parent=1 // pred_region
      %102 = vsyncadd [#allocation4], 0
      %s104 = sshll.u32 %s3, 4
      %s105 = int_to_ptr.hbm [resolvable:$true] %s104
      %107 = dma.smem_to_hbm [#allocation3], 16, %s105, [#allocation4]
    $region25: #{tpu_custom_call.1} parent=1 // pred_fallthru
      _
    // Predicated region
    $region26: #{tpu_custom_call.1} parent=1 // pred_check
      _
    $region27: #{tpu_custom_call.1} parent=1 // pred_check_branch
      %109 = sbr.rel (0) target = $region29
    $region28: #{tpu_custom_call.1} parent=1 // pred_region
      %111 = dma.done [#allocation4], 16
    $region29: #{tpu_custom_call.1} parent=1 // pred_fallthru
      _
    %112 = sfence
    %113 = vsyncpa [#allocation4], 1

</llo_original>
